<compile_context>
chip_gen: v5e
topology: v5e:2x2
jax: 0.10.0
libtpu: 0.0.40
codegen_flags: <defaults>
</compile_context>

<pallas_src>
import functools

import jax
import jax.numpy as jnp
from jax.experimental import pallas as pl
from jax.experimental.pallas import tpu as pltpu


def _vmem_budget_bytes():
    """Scoped-VMEM budget: physical minus headroom; conservative fallback = v7x."""
    try:
        cap = int(pltpu.get_tpu_info().vmem_capacity_bytes)
    except Exception:
        cap = 64 * 1024 * 1024          # v7x per-core physical (smallest modern)
    return max(cap - 16 * 1024 * 1024, cap // 2)


def _pick_spatial_tile(C, L, itemsize, budget):
    """Lane-dense (multiple-of-128) spatial tile for the two-pass fallback.

    Sized by bytes: per pipeline step pass 2 holds ~2 buffers x (in + out) =
    4*C*tl*itemsize; keep a 1.5x margin vs the budget.  Target >= ~2 MiB per
    DMA to amortize the ~0.35 us per-grid-step overhead, never exceeding the
    spatial extent.
    """
    if L < 128:
        return L                         # full extent (only legal choice)
    max_tl = (budget // (6 * C * itemsize)) // 128 * 128
    target_tl = ((2 * 1024 * 1024) // (C * itemsize)) // 128 * 128
    tl = max(128, min(max_tl, max(target_tl, 128)))
    tl = min(tl, (L // 128) * 128)
    return max(tl, 128)


# --------------------------- fused single pass ---------------------------- #

def _fused_kernel(x_ref, w_ref, b_ref, o_ref, *, inv_l):
    # x_ref: (C, L) one batch element; w_ref: (C, C); b_ref: (C, 1); o_ref: (C, L)
    x = x_ref[...]
    mean = jnp.sum(x.astype(jnp.float32), axis=-1, keepdims=True) * inv_l   # (C,1)
    logits = jnp.dot(w_ref[...].astype(jnp.float32), mean,
                     preferred_element_type=jnp.float32)
    logits = logits + b_ref[...].astype(jnp.float32)
    # Hardsigmoid: clip(x/6 + 0.5, 0, 1)
    att = jnp.clip(logits * (1.0 / 6.0) + 0.5, 0.0, 1.0)                    # (C,1)
    # Rescale in the native dtype (bf16 multiply stays on the bf16 VPU).
    o_ref[...] = x * att.astype(x.dtype)


# ------------------------- two-pass fallback path ------------------------- #

def _pool_kernel(x_ref, mean_ref, acc_ref, *, inv_l, l_total, tl):
    # x_ref: (C, tl); mean_ref: (C, 1) f32; acc_ref: (C, 128) f32 scratch.
    l = pl.program_id(1)

    @pl.when(l == 0)
    def _init():
        acc_ref[...] = jnp.zeros_like(acc_ref)

    xf = x_ref[...].astype(jnp.float32)
    # Grid uses cdiv(L, tl): mask the (possibly partial) tail tile.
    lane = jax.lax.broadcasted_iota(jnp.int32, xf.shape, 1) + l * tl
    xf = jnp.where(lane < l_total, xf, 0.0)

    # Fold the tile into a wide (C, 128) accumulator with pure VPU adds;
    # the single cross-lane (XLU) reduce only happens in the finalize branch.
    part = xf[:, 0:128]
    for k in range(1, tl // 128):
        part = part + xf[:, k * 128:(k + 1) * 128]
    acc_ref[...] += part

    @pl.when(l == pl.num_programs(1) - 1)
    def _finalize():
        mean_ref[...] = jnp.sum(acc_ref[...], axis=-1, keepdims=True) * inv_l


def _scale_kernel(x_ref, att_ref, o_ref):
    # x_ref: (C, tl); att_ref: (C, 1) already in x dtype; native-dtype multiply.
    o_ref[...] = x_ref[...] * att_ref[...]


# -------------------------------- wrapper ---------------------------------- #

def rtmdet_channel_attention(x, weight, bias, *, vmem_budget_bytes=None):
    """x: (B, C, H, W); weight: (C, C, 1, 1) or (C, C); bias: (C,)."""
    B, C, H, W = x.shape
    L = H * W
    itemsize = jnp.dtype(x.dtype).itemsize

    x_l = x.reshape(B, C, L)            # contiguous reshape -> lane-dense layout
    w2 = weight.reshape(C, C)
    b2 = bias.reshape(C, 1)

    hw_budget = _vmem_budget_bytes()
    plan_budget = hw_budget if vmem_budget_bytes is None else int(vmem_budget_bytes)
    vmem_limit = int(hw_budget)

    # Fused-path VMEM estimate: double-buffered (C, L) in + out blocks, plus the
    # (small) double-buffered weight/bias and ~1 MiB compiler headroom.
    fused_bytes = (4 * C * L * itemsize
                   + 2 * C * C * jnp.dtype(w2.dtype).itemsize
                   + 2 * C * jnp.dtype(b2.dtype).itemsize
                   + (1 << 20))

    if fused_bytes <= plan_budget or L < 128:
        # --- Fused single pass: pool + 1x1 conv + hardsigmoid + rescale. ---
        # NOTE: grid=(B,) is the only parallel axis; for B == 1 on v7x this runs
        # on one TensorCore (one core still drives its full HBM port).  w/b block
        # indices never change; pl.Buffered(1) would halve their footprint at
        # very large C (left at the default double buffer for safety).
        # input_output_aliases={0: 0} could be added when the caller can donate
        # x, halving peak HBM activation footprint.
        out = pl.pallas_call(
            functools.partial(_fused_kernel, inv_l=1.0 / L),
            out_shape=jax.ShapeDtypeStruct((B, C, L), x.dtype),
            grid_spec=pltpu.PrefetchScalarGridSpec(
                num_scalar_prefetch=0,
                grid=(B,),
                in_specs=[
                    pl.BlockSpec((None, C, L), lambda b: (b, 0, 0)),
                    pl.BlockSpec((C, C), lambda b: (0, 0)),
                    pl.BlockSpec((C, 1), lambda b: (0, 0)),
                ],
                out_specs=pl.BlockSpec((None, C, L), lambda b: (b, 0, 0)),
            ),
            compiler_params=pltpu.CompilerParams(
                dimension_semantics=("parallel",),
                vmem_limit_bytes=vmem_limit),
            cost_estimate=pl.CostEstimate(
                flops=int(2 * B * C * (L + C)),
                transcendentals=0,
                bytes_accessed=int(2 * B * C * L * itemsize + C * C * 4)),
        )(x_l, w2, b2)
        return out.reshape(B, C, H, W)

    # --- Fallback for huge C*L: two bandwidth-bound streaming passes. ---
    tl = _pick_spatial_tile(C, L, itemsize, plan_budget)
    n_l = pl.cdiv(L, tl)

    # Pass 1: pure per-channel mean reduction (no weights in the stream loop).
    mean = pl.pallas_call(
        functools.partial(_pool_kernel, inv_l=1.0 / L, l_total=L, tl=tl),
        out_shape=jax.ShapeDtypeStruct((B, C, 1), jnp.float32),
        grid_spec=pltpu.PrefetchScalarGridSpec(
            num_scalar_prefetch=0,
            grid=(B, n_l),
            in_specs=[pl.BlockSpec((None, C, tl), lambda b, l: (b, 0, l))],
            out_specs=pl.BlockSpec((None, C, 1), lambda b, l: (b, 0, 0)),
            scratch_shapes=[pltpu.VMEM((C, 128), jnp.float32)],
        ),
        compiler_params=pltpu.CompilerParams(
            dimension_semantics=("parallel", "arbitrary"),
            vmem_limit_bytes=vmem_limit),
        cost_estimate=pl.CostEstimate(
            flops=int(B * C * L), transcendentals=0,
            bytes_accessed=int(B * C * L * itemsize)),
    )(x_l)

    # Tiny (B, C) 1x1 conv + hardsigmoid in plain JAX: the degenerate
    # (C,C)x(C,1) matvec does not belong in the streaming loop.
    logits = mean[..., 0] @ w2.astype(jnp.float32).T + bias.astype(jnp.float32)
    att = jnp.clip(logits * (1.0 / 6.0) + 0.5, 0.0, 1.0)
    att = att.astype(x.dtype)[:, :, None]                           # (B, C, 1)

    # Pass 2: channel-wise rescale, both axes parallel (megacore-friendly).
    out = pl.pallas_call(
        _scale_kernel,
        out_shape=jax.ShapeDtypeStruct((B, C, L), x.dtype),
        grid_spec=pltpu.PrefetchScalarGridSpec(
            num_scalar_prefetch=0,
            grid=(B, n_l),
            in_specs=[
                pl.BlockSpec((None, C, tl), lambda b, l: (b, 0, l)),
                pl.BlockSpec((None, C, 1), lambda b, l: (b, 0, 0)),
            ],
            out_specs=pl.BlockSpec((None, C, tl), lambda b, l: (b, 0, l)),
        ),
        compiler_params=pltpu.CompilerParams(
            dimension_semantics=("parallel", "parallel"),
            vmem_limit_bytes=vmem_limit),
        cost_estimate=pl.CostEstimate(
            flops=int(B * C * L), transcendentals=0,
            bytes_accessed=int(2 * B * C * L * itemsize)),
    )(x_l, att)

    return out.reshape(B, C, H, W)


# ------------------------------- reference --------------------------------- #

def _reference(x, weight, bias):
    B, C, H, W = x.shape
    pooled = jnp.mean(x.astype(jnp.float32), axis=(2, 3))           # (B, C)
    w2 = weight.reshape(C, C).astype(jnp.float32)
    logits = pooled @ w2.T + bias.astype(jnp.float32)
    att = jnp.clip(logits / 6.0 + 0.5, 0.0, 1.0)
    return (x.astype(jnp.float32) * att[:, :, None, None]).astype(x.dtype)


if __name__ == "__main__":
    key = jax.random.PRNGKey(0)
    kx, kw, kb, kx2 = jax.random.split(key, 4)

    # --- Test 1: fused single-pass path (f32). ---
    B, C, H, W = 2, 4, 16, 16
    x = jax.random.normal(kx, (B, C, H, W), dtype=jnp.float32)
    weight = jax.random.normal(kw, (C, C, 1, 1), dtype=jnp.float32) * 0.1
    bias = jax.random.normal(kb, (C,), dtype=jnp.float32) * 0.1

    out = jax.block_until_ready(rtmdet_channel_attention(x, weight, bias))
    ref = _reference(x, weight, bias)
    assert out.shape == ref.shape, (out.shape, ref.shape)
    assert jnp.allclose(out, ref, atol=1e-5, rtol=1e-5), \
        float(jnp.max(jnp.abs(out - ref)))

    # --- Test 2: fused path with bf16 activations (native-dtype rescale). ---
    xb = x.astype(jnp.bfloat16)
    outb = jax.block_until_ready(rtmdet_channel_attention(xb, weight, bias))
    refb = _reference(xb, weight, bias)
    assert outb.dtype == jnp.bfloat16
    assert jnp.allclose(outb.astype(jnp.float32), refb.astype(jnp.float32),
                        atol=5e-2, rtol=5e-2)

    # --- Test 3: forced two-pass fallback (tiny planning budget), ragged L. ---
    H2, W2 = 20, 20   # L = 400: multiple spatial tiles with a masked tail at tl=128
    x2 = jax.random.normal(kx2, (B, C, H2, W2), dtype=jnp.float32)
    out2 = jax.block_until_ready(
        rtmdet_channel_attention(x2, weight, bias, vmem_budget_bytes=4096))
    ref2 = _reference(x2, weight, bias)
    assert out2.shape == ref2.shape, (out2.shape, ref2.shape)
    assert jnp.allclose(out2, ref2, atol=1e-5, rtol=1e-5), \
        float(jnp.max(jnp.abs(out2 - ref2)))

    print("KERNEL_OK")
</pallas_src>

<mosaic_0001>
module attributes {stable_mosaic.version = 11 : i64} {
  func.func @_fused_kernel(%arg0: i32, %arg1: memref<1x4x256xf32, #tpu.memory_space<vmem>>, %arg2: memref<4x4xf32, #tpu.memory_space<vmem>>, %arg3: memref<4x1xf32, #tpu.memory_space<vmem>>, %arg4: memref<1x4x256xf32, #tpu.memory_space<vmem>>) attributes {dimension_semantics = [#tpu.dimension_semantics<parallel>], iteration_bounds = array<i64: 2>, scalar_prefetch = 0 : i64, scratch_operands = 0 : i64, tpu.core_type = #tpu.core_type<tc>, window_params = [{transform_indices = @transform_0, window_bounds = array<i64: 1, 4, 256>}, {pipeline_mode = #tpu.pipeline_mode<synchronous>, transform_indices = @transform_1, window_bounds = array<i64: 4, 4>}, {pipeline_mode = #tpu.pipeline_mode<synchronous>, transform_indices = @transform_2, window_bounds = array<i64: 4, 1>}, {transform_indices = @transform_3, window_bounds = array<i64: 1, 4, 256>}]} {
    %c0 = arith.constant 0 : index
    %c0_0 = arith.constant 0 : index
    %c0_1 = arith.constant 0 : index
    %0 = vector.load %arg1[%c0, %c0_0, %c0_1] : memref<1x4x256xf32, #tpu.memory_space<vmem>>, vector<1x4x256xf32>
    %1 = vector.shape_cast %0 : vector<1x4x256xf32> to vector<4x256xf32>
    %cst = arith.constant dense<0.000000e+00> : vector<4xf32>
    %2 = vector.multi_reduction <add>, %1, %cst [1] : vector<4x256xf32> to vector<4xf32>
    %3 = vector.shape_cast %2 : vector<4xf32> to vector<4x1xf32>
    %cst_2 = arith.constant 3.906250e-03 : f32
    %4 = vector.broadcast %cst_2 : f32 to vector<4x1xf32>
    %5 = arith.mulf %3, %4 : vector<4x1xf32>
    %c0_3 = arith.constant 0 : index
    %c0_4 = arith.constant 0 : index
    %6 = vector.load %arg2[%c0_3, %c0_4] : memref<4x4xf32, #tpu.memory_space<vmem>>, vector<4x4xf32>
    %cst_5 = arith.constant dense<0.000000e+00> : vector<4x1xf32>
    %7 = tpu.matmul %6, %5, %cst_5 {dimension_numbers = #tpu.dot_dimension_numbers<[1], [0], [0], [1], [0, 0, 1, 1], [], []>} : vector<4x4xf32>, vector<4x1xf32>, vector<4x1xf32> -> vector<4x1xf32>
    %c0_6 = arith.constant 0 : index
    %c0_7 = arith.constant 0 : index
    %8 = vector.load %arg3[%c0_6, %c0_7] : memref<4x1xf32, #tpu.memory_space<vmem>>, vector<4x1xf32>
    %9 = arith.addf %7, %8 : vector<4x1xf32>
    %cst_8 = arith.constant 0.166666672 : f32
    %10 = vector.broadcast %cst_8 : f32 to vector<4x1xf32>
    %11 = arith.mulf %9, %10 : vector<4x1xf32>
    %cst_9 = arith.constant 5.000000e-01 : f32
    %12 = vector.broadcast %cst_9 : f32 to vector<4x1xf32>
    %13 = arith.addf %11, %12 : vector<4x1xf32>
    %cst_10 = arith.constant 0.000000e+00 : f32
    %cst_11 = arith.constant 1.000000e+00 : f32
    %14 = vector.broadcast %cst_10 : f32 to vector<4x1xf32>
    %15 = arith.maximumf %14, %13 : vector<4x1xf32>
    %16 = vector.broadcast %cst_11 : f32 to vector<4x1xf32>
    %17 = arith.minimumf %16, %15 : vector<4x1xf32>
    %18 = vector.broadcast %17 : vector<4x1xf32> to vector<4x256xf32>
    %19 = arith.mulf %1, %18 : vector<4x256xf32>
    %c0_12 = arith.constant 0 : index
    %c0_13 = arith.constant 0 : index
    %c0_14 = arith.constant 0 : index
    %20 = vector.load %arg4[%c0_12, %c0_13, %c0_14] : memref<1x4x256xf32, #tpu.memory_space<vmem>>, vector<1x4x256xf32>
    %21 = vector.shape_cast %20 : vector<1x4x256xf32> to vector<4x256xf32>
    %22 = vector.shape_cast %19 : vector<4x256xf32> to vector<1x4x256xf32>
    tpu.vector_store %arg4[%c0_12, %c0_13, %c0_14], %22 {strides = array<i32>} : memref<1x4x256xf32, #tpu.memory_space<vmem>>, vector<1x4x256xf32>,
    return
  }
  func.func @transform_0(%arg0: i32) -> (i32, i32, i32) {
    %c0_i32 = arith.constant 0 : i32
    %c0_i32_0 = arith.constant 0 : i32
    %c0_i32_1 = arith.constant 0 : i32
    return %arg0, %c0_i32, %c0_i32_0 : i32, i32, i32
  }
  func.func @transform_1(%arg0: i32) -> (i32, i32) {
    %c0_i32 = arith.constant 0 : i32
    %c0_i32_0 = arith.constant 0 : i32
    %c0_i32_1 = arith.constant 0 : i32
    return %c0_i32, %c0_i32_0 : i32, i32
  }
  func.func @transform_2(%arg0: i32) -> (i32, i32) {
    %c0_i32 = arith.constant 0 : i32
    %c0_i32_0 = arith.constant 0 : i32
    %c0_i32_1 = arith.constant 0 : i32
    return %c0_i32, %c0_i32_0 : i32, i32
  }
  func.func @transform_3(%arg0: i32) -> (i32, i32, i32) {
    %c0_i32 = arith.constant 0 : i32
    %c0_i32_0 = arith.constant 0 : i32
    %c0_i32_1 = arith.constant 0 : i32
    return %arg0, %c0_i32, %c0_i32_0 : i32, i32, i32
  }
}

</mosaic_0001>

<llo_original>
// kernel: tpu_custom_call.1
$region0: #{tpu_custom_call.1}
  #allocation0 [shape = 'u32[]', space=smem, size = 0x4, offset = 0x4, fixed_abs, tag = 'smem constant byte address 0x4 - core index']
  #allocation1 [shape = 'u32[72,128]{1,0:T(1,128)}', space=vmem, size = 0x9000, scoped, tag = 'internal scratch']
  %s0 = inlined_call_operand.hbm [shape: f32[2,4,256], index: 0, kind: input, shape index: {}]
  %s1 = inlined_call_operand.vmem [shape: f32[4,4], index: 1, kind: input, shape index: {}]
  %s2 = inlined_call_operand.vmem [shape: f32[4,1], index: 2, kind: input, shape index: {}]
  %s3 = inlined_call_operand.hbm [shape: f32[2,4,256], index: 3, kind: output, shape index: {}]
  %s4 = sld [smem:[#allocation0]]
  $region49: #{tpu_custom_call.1} parent=0
    _
  %s6 = ssub.s32 1, %s4
  %s7 = scalar_select 0, %s6, %s4
  $region1: #{tpu_custom_call.1} parent=0
    #allocation2 [shape = 'u8[8192]{0}', space=vmem, size = 0x2000, scoped, tag = 'input window, operand 0']
    #allocation3 [shape = 's32[2]{0}', space=sflag, size = 0x8, scoped, tag = 'scoped memory for tpu_custom_call.1']
    #allocation4 [shape = 's32[2]{0}', space=sflag, size = 0x8, scoped, tag = 'scoped memory for tpu_custom_call.1']
    #allocation5 [shape = 'u8[8192]{0}', space=vmem, size = 0x2000, scoped, tag = 'output window, operand 0']
    %8 = vsyncpa [#allocation3], 0
    %s9 = scalar_lea.sflag [#allocation3], 1
    %10 = vsyncpa %s9, 0
    %11 = vsyncpa [#allocation4], 0
    %s12 = scalar_lea.sflag [#allocation4], 1
    %13 = vsyncpa %s12, 0
    loop: start=0, step=1, limit=4
    $region2: #{tpu_custom_call.1} parent=1 // loop_pre_header
      _
    $region3: #{tpu_custom_call.1} parent=1 // loop_header
      %s15 = sphi 0, %s19
      %p16 = scmp.ge.s32.totalorder %s15, 4
      %s25 = sphi 0, %s27
      %s28 = sphi 0, %s25
      %s29 = sphi 0, %s28
      %s45 = sphi 0, %s29
      %s49 = sphi 0, %s49
      %s51 = sphi 0, %s49
      %s52 = sphi 0, %s51
      %s66 = sphi 0, %s52
      %s70 = sphi 0, %s70
      %s72 = sphi 0, %s70
      %s73 = sphi 0, %s72
      %s87 = sphi 0, %s73
      %s93 = sphi 0, %s95
      %s96 = sphi 0, %s93
      %s97 = sphi 0, %s96
      %s113 = sphi 0, %s97
    $region4: #{tpu_custom_call.1} parent=1 // loop_header_branch
      %18 = sbr.rel (%p16) target = $region8
    $region5: #{tpu_custom_call.1} parent=1 // loop_body
      %s20 = ssub.s32 %s15, 1
      %s21 = ssub.s32 %s15, 2
      %s22 = sadd.s32 %s15, 1
      %s23 = ssub.s32 %s15, %s22
      %p24 = scmp.eq.s32.totalorder %s23, 0
      %s26 = sadd.s32 %s25, 1
      %s27 = scalar_select %p24, %s25, %s26
      %p30 = pneg %p24
      %p31 = scmp.eq.s32.totalorder %s15, 1
      %p32 = por %p30, %p31
      %p33 = scmp.ne.s32.totalorder %s25, %s28
      %p34 = scmp.eq.s32.totalorder %s15, 0
      %p35 = por %p33, %p34
      %p36 = scmp.ne.s32.totalorder %s25, %s28
      %p37 = scmp.eq.s32.totalorder %s20, 1
      %p38 = por %p36, %p37
      %p39 = scmp.ne.s32.totalorder %s28, %s29
      %p40 = scmp.eq.s32.totalorder %s20, 0
      %p41 = por %p39, %p40
      %p42 = scmp.ne.s32.totalorder %s28, %s29
      %p43 = scmp.eq.s32.totalorder %s21, 1
      %p44 = por %p42, %p43
      %p46 = scmp.ne.s32.totalorder %s29, %s45
      %p47 = scmp.eq.s32.totalorder %s21, 0
      %p48 = por %p46, %p47
      %s50 = sadd.s32 %s49, 1
      %p53 = scmp.eq.s32.totalorder %s15, 1
      %p54 = scmp.ne.s32.totalorder %s49, %s51
      %p55 = scmp.eq.s32.totalorder %s15, 0
      %p56 = por %p54, %p55
      %p57 = scmp.ne.s32.totalorder %s49, %s51
      %p58 = scmp.eq.s32.totalorder %s20, 1
      %p59 = por %p57, %p58
      %p60 = scmp.ne.s32.totalorder %s51, %s52
      %p61 = scmp.eq.s32.totalorder %s20, 0
      %p62 = por %p60, %p61
      %p63 = scmp.ne.s32.totalorder %s51, %s52
      %p64 = scmp.eq.s32.totalorder %s21, 1
      %p65 = por %p63, %p64
      %p67 = scmp.ne.s32.totalorder %s52, %s66
      %p68 = scmp.eq.s32.totalorder %s21, 0
      %p69 = por %p67, %p68
      %s71 = sadd.s32 %s70, 1
      %p74 = scmp.eq.s32.totalorder %s15, 1
      %p75 = scmp.ne.s32.totalorder %s70, %s72
      %p76 = scmp.eq.s32.totalorder %s15, 0
      %p77 = por %p75, %p76
      %p78 = scmp.ne.s32.totalorder %s70, %s72
      %p79 = scmp.eq.s32.totalorder %s20, 1
      %p80 = por %p78, %p79
      %p81 = scmp.ne.s32.totalorder %s72, %s73
      %p82 = scmp.eq.s32.totalorder %s20, 0
      %p83 = por %p81, %p82
      %p84 = scmp.ne.s32.totalorder %s72, %s73
      %p85 = scmp.eq.s32.totalorder %s21, 1
      %p86 = por %p84, %p85
      %p88 = scmp.ne.s32.totalorder %s73, %s87
      %p89 = scmp.eq.s32.totalorder %s21, 0
      %p90 = por %p88, %p89
      %s91 = ssub.s32 %s15, %s22
      %p92 = scmp.eq.s32.totalorder %s91, 0
      %s94 = sadd.s32 %s93, 1
      %s95 = scalar_select %p92, %s93, %s94
      %p98 = pneg %p92
      %p99 = scmp.eq.s32.totalorder %s15, 1
      %p100 = por %p98, %p99
      %p101 = scmp.ne.s32.totalorder %s93, %s96
      %p102 = scmp.eq.s32.totalorder %s15, 0
      %p103 = por %p101, %p102
      %p104 = scmp.ne.s32.totalorder %s93, %s96
      %p105 = scmp.eq.s32.totalorder %s20, 1
      %p106 = por %p104, %p105
      %p107 = scmp.ne.s32.totalorder %s96, %s97
      %p108 = scmp.eq.s32.totalorder %s20, 0
      %p109 = por %p107, %p108
      %p110 = scmp.ne.s32.totalorder %s96, %s97
      %p111 = scmp.eq.s32.totalorder %s21, 1
      %p112 = por %p110, %p111
      %p114 = scmp.ne.s32.totalorder %s97, %s113
      %p115 = scmp.eq.s32.totalorder %s21, 0
      %p116 = por %p114, %p115
      %p117 = scmp.le.s32.totalorder 1, %s15
      %p118 = scmp.lt.s32.totalorder %s15, 3
      %p119 = pnand %p117, %p118
      %p120 = pneg %p119
      // Predicated region
      $region9: #{tpu_custom_call.1} parent=5 // pred_check
        _
      $region10: #{tpu_custom_call.1} parent=5 // pred_check_branch
        %122 = sbr.rel (%p119) target = $region12
      $region11: #{tpu_custom_call.1} parent=5 // pred_region
        %s123 = ssub.s32 %s15, 1
        // Predicated region
        $region13: #{tpu_custom_call.1} parent=11 // pred_check
          %p124 = pneg %p62
        $region14: #{tpu_custom_call.1} parent=11 // pred_check_branch
          %126 = sbr.rel (%p124) target = $region16
        $region15: #{tpu_custom_call.1} parent=11 // pred_region
          _
        $region16: #{tpu_custom_call.1} parent=11 // pred_fallthru
          _
        // Predicated region
        $region17: #{tpu_custom_call.1} parent=11 // pred_check
          %p127 = pneg %p83
        $region18: #{tpu_custom_call.1} parent=11 // pred_check_branch
          %129 = sbr.rel (%p127) target = $region20
        $region19: #{tpu_custom_call.1} parent=11 // pred_region
          _
        $region20: #{tpu_custom_call.1} parent=11 // pred_fallthru
          _
      $region12: #{tpu_custom_call.1} parent=5 // pred_fallthru
        _
      %p130 = scmp.lt.s32.totalorder %s15, 2
      // Predicated region
      $region21: #{tpu_custom_call.1} parent=5 // pred_check
        %p131 = pneg %p130
      $region22: #{tpu_custom_call.1} parent=5 // pred_check_branch
        %133 = sbr.rel (%p131) target = $region24
      $region23: #{tpu_custom_call.1} parent=5 // pred_region
        // Predicated region
        $region25: #{tpu_custom_call.1} parent=23 // pred_check
          %p134 = pneg %p35
        $region26: #{tpu_custom_call.1} parent=23 // pred_check_branch
          %136 = sbr.rel (%p134) target = $region28
        $region27: #{tpu_custom_call.1} parent=23 // pred_region
          %s137 = sand.u32 %s25, 1
          %s138 = scalar_lea.sflag [#allocation3], %s137
          %s139 = sand.u32 %s25, 1
          %s140 = smul.addr %s139, 8
          %s141 = scalar_lea.vmem [#allocation2], %s140
          %143 = vsyncadd %s138, 0
          %s144 = smul.addr %s15, 2
          %s145 = smul.addr %s144, 4
          %s146 = scalar_lea.hbm %s0, %s145
          %s148 = sshll.u32 %s146, 4
          %s149 = int_to_ptr.hbm [resolvable:$true] %s148
          %s150 = sshll.u32 %s141, 4
          %s151 = int_to_ptr.vmem [resolvable:$true] %s150
          %153 = dma.hbm_to_vmem [thread:$0]  %s149, 128, %s151, %s138
        $region28: #{tpu_custom_call.1} parent=23 // pred_fallthru
          _
      $region24: #{tpu_custom_call.1} parent=5 // pred_fallthru
        _
      %p154 = scmp.le.s32.totalorder 1, %s15
      %p155 = scmp.lt.s32.totalorder %s15, 3
      %p156 = pnand %p154, %p155
      %p157 = pneg %p156
      // Predicated region
      $region29: #{tpu_custom_call.1} parent=5 // pred_check
        _
      $region30: #{tpu_custom_call.1} parent=5 // pred_check_branch
        %159 = sbr.rel (%p156) target = $region32
      $region31: #{tpu_custom_call.1} parent=5 // pred_region
        %s160 = ssub.s32 %s15, 1
        %s161 = sand.u32 %s28, 1
        %s162 = scalar_lea.sflag [#allocation3], %s161
        %s163 = sand.u32 %s28, 1
        %s164 = smul.addr %s163, 8
        %s165 = scalar_lea.vmem [#allocation2], %s164
        // Predicated region
        $region33: #{tpu_custom_call.1} parent=31 // pred_check
          %p166 = pneg %p41
        $region34: #{tpu_custom_call.1} parent=31 // pred_check_branch
          %168 = sbr.rel (%p166) target = $region36
        $region35: #{tpu_custom_call.1} parent=31 // pred_region
          %170 = dma.done %s162, 128
        $region36: #{tpu_custom_call.1} parent=31 // pred_fallthru
          _
        %s171 = sand.u32 %s28, 1
        %s172 = scalar_lea.sflag [#allocation3], %s171
        %s173 = sand.u32 %s28, 1
        %s174 = smul.addr %s173, 8
        %s175 = scalar_lea.vmem [#allocation2], %s174
        %p176 = pneg %p41
        %p177 = pneg %p38
        %p178 = pneg %p62
        %p179 = pneg %p59
        %p180 = pneg %p83
        %p181 = pneg %p80
        %p182 = pneg %p109
        %p183 = pneg %p106
        %s184 = sand.u32 %s96, 1
        %s185 = scalar_lea.sflag [#allocation4], %s184
        %s186 = sand.u32 %s96, 1
        %s187 = smul.addr %s186, 8
        %s188 = scalar_lea.vmem [#allocation5], %s187
        %v189 = vld [vmem:[%s165] sm:$0xff]
        %191 = vst [vmem:[#allocation1] ss:$2 sm:$0xff] %v189
        %v192 = vld.sshfl [vmem:[#allocation1] sm:$0xff pattern:$0x75316420]
        %v193 = vld.sshfl [vmem:[#allocation1 + $0x8] sm:$0xff pattern:$0x75316420]
        %vm196 = vcmask 1043456
        %v197 = vsel %vm196, %v192, 0.0
        %v198 = vsel %vm196, %v193, 0.0
        %v199 = vadd.f32 %v197, %v198
        %200 = vadd.xlane.f32.xlu0 %v199
        %v201 = vpop.xlane.xlu0 %200
        %v202 = vmul.f32 %v201, 0.00390625
        %v203 = vld [vmem:[%s1] sm:$0xf]
        %v204 = vld [vmem:[%s2] sm:$0xf]
        %vm205 = vcmask 31744
        %v207 = vsel %vm205, %v203, 0
        %v210 = vsel %vm196, %v202, 0
        %212 = vmatpush.msra.mxu0 0.0
        %213 = vmatpush.msra.mxu0 0.0
        %214 = vmatpush.msra.mxu0 0.0
        %215 = vmatpush.msra.mxu0 0.0
        %216 = vmatpush.msra.mxu0 0.0
        %217 = vmatpush.msra.mxu0 0.0
        %218 = vmatpush.msra.mxu0 0.0
        %219 = vmatpush.msra.mxu0 0.0
        %220 = vmatpush.msra.mxu0 0.0
        %221 = vmatpush.msra.mxu0 0.0
        %222 = vmatpush.msra.mxu0 0.0
        %223 = vmatpush.msra.mxu0 0.0
        %224 = vmatpush.msra.mxu0 0.0
        %225 = vmatpush.msra.mxu0 0.0
        %226 = vmatpush.msra.mxu0 0.0
        %227 = vmatpush.msra.mxu0 %v210
        %228 = vmatmul.f32.gmra.mxu0 %v207
        %v229 = vpop.f32.mrf.mxu0
        %v230 = vadd.f32 %v204, %v229
        %231 = vdwg.mxu0
        %v232 = vmul.f32 %v230, 0.16666667
        %v233 = vadd.f32 %v232, 0.5
        %v234 = vmax.f32 %v233, 0.0
        %v235 = vmin.f32 %v234, 1.0
        %237 = vset.pattern.permute.xlu0 0
        %238 = vperm.xlu0 %237, %v235
        %v239 = vpop.permute.xlu0 %238
        %v241 = vunpack.c.l.s4 839922192
        %v242 = vunpack.c.0.s8 %v241
        %v243 = vperm.slane %v239, %v242
        %v245 = vmul.f32 %v189, %v243
        %246 = vst [vmem:[%s188] sm:$0xff] %v245
        %s247 = sand.u32 %s96, 1
        %s248 = scalar_lea.sflag [#allocation4], %s247
        %s249 = sand.u32 %s96, 1
        %s250 = smul.addr %s249, 8
        %s251 = scalar_lea.vmem [#allocation5], %s250
        // Predicated region
        $region37: #{tpu_custom_call.1} parent=31 // pred_check
          %p252 = pneg %p106
        $region38: #{tpu_custom_call.1} parent=31 // pred_check_branch
          %254 = sbr.rel (%p252) target = $region40
        $region39: #{tpu_custom_call.1} parent=31 // pred_region
          %256 = vsyncadd %s248, 0
          %s257 = smul.addr %s20, 2
          %s258 = smul.addr %s257, 4
          %s259 = scalar_lea.hbm %s3, %s258
          %s261 = sshll.u32 %s251, 4
          %s262 = int_to_ptr.vmem [resolvable:$true] %s261
          %s263 = sshll.u32 %s259, 4
          %s264 = int_to_ptr.hbm [resolvable:$true] %s263
          %266 = dma.vmem_to_hbm [thread:$0]  %s262, 128, %s264, %s248
        $region40: #{tpu_custom_call.1} parent=31 // pred_fallthru
          _
      $region32: #{tpu_custom_call.1} parent=5 // pred_fallthru
        _
      %p267 = scmp.le.s32.totalorder 2, %s15
      // Predicated region
      $region41: #{tpu_custom_call.1} parent=5 // pred_check
        %p268 = pneg %p267
      $region42: #{tpu_custom_call.1} parent=5 // pred_check_branch
        %270 = sbr.rel (%p268) target = $region44
      $region43: #{tpu_custom_call.1} parent=5 // pred_region
        %s271 = ssub.s32 %s15, 2
        // Predicated region
        $region45: #{tpu_custom_call.1} parent=43 // pred_check
          %p272 = pneg %p112
        $region46: #{tpu_custom_call.1} parent=43 // pred_check_branch
          %274 = sbr.rel (%p272) target = $region48
        $region47: #{tpu_custom_call.1} parent=43 // pred_region
          %s275 = sand.u32 %s97, 1
          %s276 = scalar_lea.sflag [#allocation4], %s275
          %s277 = sand.u32 %s97, 1
          %s278 = smul.addr %s277, 8
          %s279 = scalar_lea.vmem [#allocation5], %s278
          %281 = dma.done %s276, 128
        $region48: #{tpu_custom_call.1} parent=43 // pred_fallthru
          _
      $region44: #{tpu_custom_call.1} parent=5 // pred_fallthru
        _
    $region6: #{tpu_custom_call.1} parent=1 // loop_footer
      %s19 = sadd.s32 1, %s15
    $region7: #{tpu_custom_call.1} parent=1 // loop_footer_branch
      %14 = sbr.rel target = $region3
    $region8: #{tpu_custom_call.1} parent=1 // loop_exit
      _
    %282 = vsyncpa [#allocation3], 1
    %s283 = scalar_lea.sflag [#allocation3], 1
    %284 = vsyncpa %s283, 1
    %285 = vsyncpa [#allocation4], 1
    %s286 = scalar_lea.sflag [#allocation4], 1
    %287 = vsyncpa %s286, 1

</llo_original>
